<compile_context>
chip_gen: v7x
topology: tpu7x:2x2x1
jax: 0.10.0
libtpu: 0.0.40
codegen_flags: <defaults>
</compile_context>

<pallas_src>
import jax
import jax.numpy as jnp
from jax.experimental import pallas as pl
from jax.experimental.pallas import tpu as pltpu

D_IN, H1, H2, D_OUT = 8, 64, 32, 30

# Row offsets of each layer inside the packed weight / bias blobs.
_R1, _R2, _R3 = 0, H1, H1 + H2          # 0, 64, 96   (64 + 32 + 30 = 126 rows)
_PACK_ROWS = 128                        # padded to a sublane-friendly 128
_PACK_COLS = 64                         # max in_features among layers

B_TILE = 2048                           # batch lanes per grid step (multiple of 128)


def mlp_kernel(xt_ref, w_ref, b_ref, o_ref):
    """One batch tile: o = W3 @ relu(W2 @ relu(W1 @ x + b1) + b2) + b3."""
    xt = xt_ref[...]                                         # [8, Bt]

    w1 = w_ref[_R1:_R1 + H1, 0:D_IN]                         # [64, 8]
    w2 = w_ref[_R2:_R2 + H2, 0:H1]                           # [32, 64]
    w3 = w_ref[_R3:_R3 + D_OUT, 0:H2]                        # [30, 32]
    b1 = b_ref[_R1:_R1 + H1, :]                              # [64, 1]
    b2 = b_ref[_R2:_R2 + H2, :]                              # [32, 1]
    b3 = b_ref[_R3:_R3 + D_OUT, :]                           # [30, 1]

    h1 = jnp.maximum(
        jnp.dot(w1, xt, preferred_element_type=jnp.float32) + b1, 0.0)   # [64, Bt]
    h2 = jnp.maximum(
        jnp.dot(w2, h1, preferred_element_type=jnp.float32) + b2, 0.0)   # [32, Bt]
    h3 = jnp.dot(w3, h2, preferred_element_type=jnp.float32) + b3        # [30, Bt]
    o_ref[...] = h3.astype(o_ref.dtype)


def pack_params(params):
    """Pack (w1,b1,w2,b2,w3,b3) into one weight blob and one bias blob (done once)."""
    w1, b1, w2, b2, w3, b3 = params
    wpack = jnp.zeros((_PACK_ROWS, _PACK_COLS), jnp.float32)
    wpack = wpack.at[_R1:_R1 + H1, 0:D_IN].set(w1.astype(jnp.float32))
    wpack = wpack.at[_R2:_R2 + H2, 0:H1].set(w2.astype(jnp.float32))
    wpack = wpack.at[_R3:_R3 + D_OUT, 0:H2].set(w3.astype(jnp.float32))
    bpack = jnp.zeros((_PACK_ROWS, 1), jnp.float32)
    bpack = bpack.at[_R1:_R1 + H1, 0].set(b1.astype(jnp.float32))
    bpack = bpack.at[_R2:_R2 + H2, 0].set(b2.astype(jnp.float32))
    bpack = bpack.at[_R3:_R3 + D_OUT, 0].set(b3.astype(jnp.float32))
    return wpack, bpack


def _round_up(n, m):
    return ((n + m - 1) // m) * m


@jax.jit
def neural_network_forward(x, wpack, bpack):
    """x: [B, 8] float32  ->  [B, 30] float32 (same semantics as PyTorch forward)."""
    B = x.shape[0]

    # Pick a lane-dense batch tile (multiple of 128), capped at B_TILE.
    if B >= B_TILE:
        bp, bt = _round_up(B, B_TILE), B_TILE
    else:
        bp = _round_up(B, 128)
        bt = bp
    num_tiles = bp // bt

    # Feature-major presentation: [in_features, padded_batch]; pad rows are zeros.
    xt = jnp.pad(x.astype(jnp.float32).T, ((0, 0), (0, bp - B)))

    cost = pl.CostEstimate(
        flops=2 * B * (D_IN * H1 + H1 * H2 + H2 * D_OUT),
        transcendentals=0,
        bytes_accessed=4 * (B * (D_IN + D_OUT) + _PACK_ROWS * (_PACK_COLS + 1)),
    )

    out_t = pl.pallas_call(
        mlp_kernel,
        out_shape=jax.ShapeDtypeStruct((D_OUT, bp), jnp.float32),
        grid=(num_tiles,),
        in_specs=[
            pl.BlockSpec((D_IN, bt), lambda i: (0, i)),                 # x tile (pipelined)
            pl.BlockSpec((_PACK_ROWS, _PACK_COLS), lambda i: (0, 0)),   # weights (resident)
            pl.BlockSpec((_PACK_ROWS, 1), lambda i: (0, 0)),            # biases  (resident)
        ],
        out_specs=pl.BlockSpec((D_OUT, bt), lambda i: (0, i)),          # lane-dense output
        compiler_params=pltpu.CompilerParams(
            dimension_semantics=("parallel",),                          # v7x: 2 TCs
        ),
        cost_estimate=cost,
    )(xt, wpack, bpack)

    return out_t[:, :B].T


def init_params(key):
    # Deterministic init mimicking PyTorch nn.Linear default
    # (uniform in [-1/sqrt(in_features), 1/sqrt(in_features)]).
    def linear(key, out_f, in_f):
        kw, kb = jax.random.split(key)
        bound = 1.0 / jnp.sqrt(in_f)
        w = jax.random.uniform(kw, (out_f, in_f), jnp.float32, -bound, bound)
        b = jax.random.uniform(kb, (out_f,), jnp.float32, -bound, bound)
        return w, b

    k1, k2, k3 = jax.random.split(key, 3)
    w1, b1 = linear(k1, H1, D_IN)
    w2, b2 = linear(k2, H2, H1)
    w3, b3 = linear(k3, D_OUT, H2)
    return (w1, b1, w2, b2, w3, b3)


if __name__ == "__main__":
    key = jax.random.PRNGKey(0)
    k_params, k_x = jax.random.split(key)

    params = init_params(k_params)
    wpack, bpack = pack_params(params)          # packed once, reused per forward

    x = jax.random.normal(k_x, (8, D_IN), dtype=jnp.float32)   # batch=8, in_features=8

    out = neural_network_forward(x, wpack, bpack)
    out = jax.block_until_ready(out)

    # Pure-JAX reference check of the fused kernel.
    w1, b1, w2, b2, w3, b3 = params
    ref = jnp.maximum(x @ w1.T + b1, 0.0)
    ref = jnp.maximum(ref @ w2.T + b2, 0.0)
    ref = ref @ w3.T + b3

    assert out.shape == (8, D_OUT)
    assert jnp.allclose(out, ref, atol=1e-4, rtol=1e-4), float(jnp.max(jnp.abs(out - ref)))

    print("KERNEL_OK")
</pallas_src>

<mosaic_0001>
module attributes {stable_mosaic.version = 11 : i64} {
  func.func @mlp_kernel(%arg0: i32, %arg1: memref<8x128xf32, #tpu.memory_space<vmem>>, %arg2: memref<128x64xf32, #tpu.memory_space<vmem>>, %arg3: memref<128x1xf32, #tpu.memory_space<vmem>>, %arg4: memref<30x128xf32, #tpu.memory_space<vmem>>) attributes {dimension_semantics = [#tpu.dimension_semantics<parallel>], iteration_bounds = array<i64: 1>, scalar_prefetch = 0 : i64, scratch_operands = 0 : i64, tpu.core_type = #tpu.core_type<tc>, window_params = [{transform_indices = @transform_0, window_bounds = array<i64: 8, 128>}, {pipeline_mode = #tpu.pipeline_mode<synchronous>, transform_indices = @transform_1, window_bounds = array<i64: 128, 64>}, {pipeline_mode = #tpu.pipeline_mode<synchronous>, transform_indices = @transform_2, window_bounds = array<i64: 128, 1>}, {transform_indices = @transform_3, window_bounds = array<i64: 30, 128>}]} {
    %c0 = arith.constant 0 : index
    %c0_0 = arith.constant 0 : index
    %0 = vector.load %arg1[%c0, %c0_0] : memref<8x128xf32, #tpu.memory_space<vmem>>, vector<8x128xf32>
    %c0_1 = arith.constant 0 : index
    %c0_2 = arith.constant 0 : index
    %1 = vector.load %arg2[%c0_1, %c0_2] : memref<128x64xf32, #tpu.memory_space<vmem>>, vector<64x8xf32>
    %c64 = arith.constant 64 : index
    %c0_3 = arith.constant 0 : index
    %2 = vector.load %arg2[%c64, %c0_3] : memref<128x64xf32, #tpu.memory_space<vmem>>, vector<32x64xf32>
    %c96 = arith.constant 96 : index
    %c0_4 = arith.constant 0 : index
    %3 = vector.load %arg2[%c96, %c0_4] : memref<128x64xf32, #tpu.memory_space<vmem>>, vector<30x32xf32>
    %c0_5 = arith.constant 0 : index
    %c0_6 = arith.constant 0 : index
    %4 = vector.load %arg3[%c0_5, %c0_6] : memref<128x1xf32, #tpu.memory_space<vmem>>, vector<64x1xf32>
    %c64_7 = arith.constant 64 : index
    %c0_8 = arith.constant 0 : index
    %5 = vector.load %arg3[%c64_7, %c0_8] : memref<128x1xf32, #tpu.memory_space<vmem>>, vector<32x1xf32>
    %c96_9 = arith.constant 96 : index
    %c0_10 = arith.constant 0 : index
    %6 = vector.load %arg3[%c96_9, %c0_10] : memref<128x1xf32, #tpu.memory_space<vmem>>, vector<30x1xf32>
    %cst = arith.constant dense<0.000000e+00> : vector<64x128xf32>
    %7 = tpu.matmul %1, %0, %cst {dimension_numbers = #tpu.dot_dimension_numbers<[1], [0], [0], [1], [0, 0, 1, 1], [], []>} : vector<64x8xf32>, vector<8x128xf32>, vector<64x128xf32> -> vector<64x128xf32>
    %8 = vector.broadcast %4 : vector<64x1xf32> to vector<64x128xf32>
    %9 = arith.addf %7, %8 : vector<64x128xf32>
    %cst_11 = arith.constant 0.000000e+00 : f32
    %10 = vector.broadcast %cst_11 : f32 to vector<64x128xf32>
    %11 = arith.maximumf %9, %10 : vector<64x128xf32>
    %cst_12 = arith.constant dense<0.000000e+00> : vector<32x128xf32>
    %12 = tpu.matmul %2, %11, %cst_12 {dimension_numbers = #tpu.dot_dimension_numbers<[1], [0], [0], [1], [0, 0, 1, 1], [], []>} : vector<32x64xf32>, vector<64x128xf32>, vector<32x128xf32> -> vector<32x128xf32>
    %13 = vector.broadcast %5 : vector<32x1xf32> to vector<32x128xf32>
    %14 = arith.addf %12, %13 : vector<32x128xf32>
    %cst_13 = arith.constant 0.000000e+00 : f32
    %15 = vector.broadcast %cst_13 : f32 to vector<32x128xf32>
    %16 = arith.maximumf %14, %15 : vector<32x128xf32>
    %cst_14 = arith.constant dense<0.000000e+00> : vector<30x128xf32>
    %17 = tpu.matmul %3, %16, %cst_14 {dimension_numbers = #tpu.dot_dimension_numbers<[1], [0], [0], [1], [0, 0, 1, 1], [], []>} : vector<30x32xf32>, vector<32x128xf32>, vector<30x128xf32> -> vector<30x128xf32>
    %18 = vector.broadcast %6 : vector<30x1xf32> to vector<30x128xf32>
    %19 = arith.addf %17, %18 : vector<30x128xf32>
    %c0_15 = arith.constant 0 : index
    %c0_16 = arith.constant 0 : index
    %20 = vector.load %arg4[%c0_15, %c0_16] : memref<30x128xf32, #tpu.memory_space<vmem>>, vector<30x128xf32>
    tpu.vector_store %arg4[%c0_15, %c0_16], %19 {strides = array<i32>} : memref<30x128xf32, #tpu.memory_space<vmem>>, vector<30x128xf32>,
    return
  }
  func.func @transform_0(%arg0: i32) -> (i32, i32) {
    %c0_i32 = arith.constant 0 : i32
    %c0_i32_0 = arith.constant 0 : i32
    return %c0_i32, %arg0 : i32, i32
  }
  func.func @transform_1(%arg0: i32) -> (i32, i32) {
    %c0_i32 = arith.constant 0 : i32
    %c0_i32_0 = arith.constant 0 : i32
    %c0_i32_1 = arith.constant 0 : i32
    return %c0_i32, %c0_i32_0 : i32, i32
  }
  func.func @transform_2(%arg0: i32) -> (i32, i32) {
    %c0_i32 = arith.constant 0 : i32
    %c0_i32_0 = arith.constant 0 : i32
    %c0_i32_1 = arith.constant 0 : i32
    return %c0_i32, %c0_i32_0 : i32, i32
  }
  func.func @transform_3(%arg0: i32) -> (i32, i32) {
    %c0_i32 = arith.constant 0 : i32
    %c0_i32_0 = arith.constant 0 : i32
    return %c0_i32, %arg0 : i32, i32
  }
}

</mosaic_0001>

<llo_original>
// kernel: neural_network_forward.1
$region0: #{neural_network_forward.1}
  #allocation0 [shape = 'u32[]', space=smem, size = 0x4, offset = 0x4, fixed_abs, tag = 'smem constant byte address 0x4 - core index']
  #allocation1 [shape = 'u32[144,128]{1,0:T(1,128)}', space=vmem, size = 0x12000, scoped, tag = 'internal scratch']
  %s0 = inlined_call_operand.vmem [shape: f32[8,128], index: 0, kind: input, shape index: {}]
  %s1 = inlined_call_operand.vmem [shape: f32[128,64], index: 1, kind: input, shape index: {}]
  %s2 = inlined_call_operand.vmem [shape: f32[128,1], index: 2, kind: input, shape index: {}]
  %s3 = inlined_call_operand.vmem [shape: f32[30,128], index: 3, kind: output, shape index: {}]
  %s4 = sld [smem:[#allocation0]]
  $region22: #{neural_network_forward.1} parent=0
    _
  %s6 = ssub.s32 1, %s4
  %s7 = scalar_select 0, %s6, %s4
  // Predicated region
  $region2: #{neural_network_forward.1} parent=0 // pred_check
    _
  $region3: #{neural_network_forward.1} parent=0 // pred_check_branch
    %9 = sbr.rel (0) target = $region5
  $region4: #{neural_network_forward.1} parent=0 // pred_region
    _
  $region5: #{neural_network_forward.1} parent=0 // pred_fallthru
    _
  // Predicated region
  $region6: #{neural_network_forward.1} parent=0 // pred_check
    _
  $region7: #{neural_network_forward.1} parent=0 // pred_check_branch
    %11 = sbr.rel (0) target = $region9
  $region8: #{neural_network_forward.1} parent=0 // pred_region
    _
  $region9: #{neural_network_forward.1} parent=0 // pred_fallthru
    _
  // Predicated region
  $region10: #{neural_network_forward.1} parent=0 // pred_check
    _
  $region11: #{neural_network_forward.1} parent=0 // pred_check_branch
    %13 = sbr.rel (0) target = $region13
  $region12: #{neural_network_forward.1} parent=0 // pred_region
    _
  $region13: #{neural_network_forward.1} parent=0 // pred_fallthru
    _
  %v14 = vld [vmem:[%s0] sm:$0xff]
  %v15 = vld [vmem:[%s1] sm:$0xff]
  %v16 = vld [vmem:[%s1 + $0x8] sm:$0xff]
  %v17 = vld [vmem:[%s1 + $0x10] sm:$0xff]
  %v18 = vld [vmem:[%s1 + $0x18] sm:$0xff]
  %v19 = vld [vmem:[%s1 + $0x20] sm:$0xff]
  %v20 = vld [vmem:[%s1 + $0x28] sm:$0xff]
  %v21 = vld [vmem:[%s1 + $0x30] sm:$0xff]
  %v22 = vld [vmem:[%s1 + $0x38] sm:$0xff]
  %v23 = vld [vmem:[%s1 + $0x40] sm:$0xff]
  %v24 = vld [vmem:[%s1 + $0x48] sm:$0xff]
  %v25 = vld [vmem:[%s1 + $0x50] sm:$0xff]
  %v26 = vld [vmem:[%s1 + $0x58] sm:$0xff]
  %v27 = vld [vmem:[%s1 + $0x60] sm:$0xff]
  %v28 = vld [vmem:[%s1 + $0x68] sm:$0xff]
  %v29 = vld [vmem:[%s1 + $0x70] sm:$0xff]
  %v30 = vld [vmem:[%s1 + $0x78] sm:$0x3f]
  %v31 = vld [vmem:[%s2] sm:$0xff]
  %v32 = vld [vmem:[%s2 + $0x8] sm:$0xff]
  %v33 = vld [vmem:[%s2 + $0x10] sm:$0xff]
  %v34 = vld [vmem:[%s2 + $0x18] sm:$0xff]
  %v35 = vld [vmem:[%s2 + $0x20] sm:$0xff]
  %v36 = vld [vmem:[%s2 + $0x28] sm:$0xff]
  %v37 = vld [vmem:[%s2 + $0x30] sm:$0xff]
  %v38 = vld [vmem:[%s2 + $0x38] sm:$0xff]
  %v39 = vld [vmem:[%s2 + $0x40] sm:$0xff]
  %v40 = vld [vmem:[%s2 + $0x48] sm:$0xff]
  %v41 = vld [vmem:[%s2 + $0x50] sm:$0xff]
  %v42 = vld [vmem:[%s2 + $0x58] sm:$0xff]
  %v43 = vld [vmem:[%s2 + $0x60] sm:$0xff]
  %v44 = vld [vmem:[%s2 + $0x68] sm:$0xff]
  %v45 = vld [vmem:[%s2 + $0x70] sm:$0xff]
  %v46 = vld [vmem:[%s2 + $0x78] sm:$0x3f]
  %48 = vset.pattern.permute.xlu0 0
  %49 = vperm.xlu0 %48, %v31
  %v50 = vpop.permute.xlu0 %49
  %53 = vset.pattern.permute.xlu0 0
  %54 = vperm.xlu0 %53, %v32
  %v55 = vpop.permute.xlu0 %54
  %58 = vset.pattern.permute.xlu0 0
  %59 = vperm.xlu0 %58, %v33
  %v60 = vpop.permute.xlu0 %59
  %63 = vset.pattern.permute.xlu0 0
  %64 = vperm.xlu0 %63, %v34
  %v65 = vpop.permute.xlu0 %64
  %68 = vset.pattern.permute.xlu0 0
  %69 = vperm.xlu0 %68, %v35
  %v70 = vpop.permute.xlu0 %69
  %73 = vset.pattern.permute.xlu0 0
  %74 = vperm.xlu0 %73, %v36
  %v75 = vpop.permute.xlu0 %74
  %78 = vset.pattern.permute.xlu0 0
  %79 = vperm.xlu0 %78, %v37
  %v80 = vpop.permute.xlu0 %79
  %83 = vset.pattern.permute.xlu0 0
  %84 = vperm.xlu0 %83, %v38
  %v85 = vpop.permute.xlu0 %84
  %vm87 = vcmask 64512
  %v89 = vsel %vm87, %v15, 0
  %v92 = vsel %vm87, %v16, 0
  %v95 = vsel %vm87, %v17, 0
  %v98 = vsel %vm87, %v18, 0
  %v101 = vsel %vm87, %v19, 0
  %v104 = vsel %vm87, %v20, 0
  %v107 = vsel %vm87, %v21, 0
  %v110 = vsel %vm87, %v22, 0
  %112 = vmatprep.subr.mxu0 0.0
  %113 = vmatpush1.msra.mxu0 %v14
  %114 = vmatprep.subr.mxu0 0.0
  %115 = vmatpush1.msra.mxu0 0.0
  %116 = vmatprep.subr.mxu0 0.0
  %117 = vmatpush1.msra.mxu0 0.0
  %118 = vmatprep.subr.mxu0 0.0
  %119 = vmatpush1.msra.mxu0 0.0
  %120 = vmatprep.subr.mxu0 0.0
  %121 = vmatpush1.msra.mxu0 0.0
  %122 = vmatprep.subr.mxu0 0.0
  %123 = vmatpush1.msra.mxu0 0.0
  %124 = vmatprep.subr.mxu0 0.0
  %125 = vmatpush1.msra.mxu0 0.0
  %126 = vmatprep.subr.mxu0 0.0
  %127 = vmatpush1.msra.mxu0 0.0
  %128 = vmatprep.subr.mxu0 0.0
  %129 = vmatpush1.msra.mxu0 0.0
  %130 = vmatprep.subr.mxu0 0.0
  %131 = vmatpush1.msra.mxu0 0.0
  %132 = vmatprep.subr.mxu0 0.0
  %133 = vmatpush1.msra.mxu0 0.0
  %134 = vmatprep.subr.mxu0 0.0
  %135 = vmatpush1.msra.mxu0 0.0
  %136 = vmatprep.subr.mxu0 0.0
  %137 = vmatpush1.msra.mxu0 0.0
  %138 = vmatprep.subr.mxu0 0.0
  %139 = vmatpush1.msra.mxu0 0.0
  %140 = vmatprep.subr.mxu0 0.0
  %141 = vmatpush1.msra.mxu0 0.0
  %142 = vmatprep.subr.mxu0 0.0
  %143 = vmatpush1.msra.mxu0 0.0
  %144 = vmatprep.subr.mxu0 0.0
  %145 = vmatpush1.msra.mxu0 0.0
  %146 = vmatprep.subr.mxu0 0.0
  %147 = vmatpush1.msra.mxu0 0.0
  %148 = vmatprep.subr.mxu0 0.0
  %149 = vmatpush1.msra.mxu0 0.0
  %150 = vmatprep.subr.mxu0 0.0
  %151 = vmatpush1.msra.mxu0 0.0
  %152 = vmatprep.subr.mxu0 0.0
  %153 = vmatpush1.msra.mxu0 0.0
  %154 = vmatprep.subr.mxu0 0.0
  %155 = vmatpush1.msra.mxu0 0.0
  %156 = vmatprep.subr.mxu0 0.0
  %157 = vmatpush1.msra.mxu0 0.0
  %158 = vmatprep.subr.mxu0 0.0
  %159 = vmatpush1.msra.mxu0 0.0
  %160 = vmatprep.subr.mxu0 0.0
  %161 = vmatpush1.msra.mxu0 0.0
  %162 = vmatprep.subr.mxu0 0.0
  %163 = vmatpush1.msra.mxu0 0.0
  %164 = vmatprep.subr.mxu0 0.0
  %165 = vmatpush1.msra.mxu0 0.0
  %166 = vmatprep.subr.mxu0 0.0
  %167 = vmatpush1.msra.mxu0 0.0
  %168 = vmatprep.subr.mxu0 0.0
  %169 = vmatpush1.msra.mxu0 0.0
  %170 = vmatprep.subr.mxu0 0.0
  %171 = vmatpush1.msra.mxu0 0.0
  %172 = vmatprep.subr.mxu0 0.0
  %173 = vmatpush1.msra.mxu0 0.0
  %174 = vmatprep.subr.mxu0 0.0
  %175 = vmatpush1.msra.mxu0 0.0
  %176 = vmatprep.mubr.f32.mxu0 0.0
  %177 = vmatmul.mubr.f32.gmra.mrb[0].mxu0 %v89
  %v178 = vpop.f32.mrb[0].mxu0
  %v179 = vadd.f32 %v50, %v178
  %v180 = vpop.f32.mrb[0].mxu0
  %181 = vmatprep.mubr.f32.mxu0 0.0
  %182 = vmatmul.mubr.f32.gmra.mrb[0].mxu0 %v92
  %v183 = vpop.f32.mrb[0].mxu0
  %v184 = vadd.f32 %v55, %v183
  %v185 = vpop.f32.mrb[0].mxu0
  %186 = vmatprep.mubr.f32.mxu0 0.0
  %187 = vmatmul.mubr.f32.gmra.mrb[0].mxu0 %v95
  %v188 = vpop.f32.mrb[0].mxu0
  %v189 = vadd.f32 %v60, %v188
  %v190 = vpop.f32.mrb[0].mxu0
  %191 = vmatprep.mubr.f32.mxu0 0.0
  %192 = vmatmul.mubr.f32.gmra.mrb[0].mxu0 %v98
  %v193 = vpop.f32.mrb[0].mxu0
  %v194 = vadd.f32 %v65, %v193
  %v195 = vpop.f32.mrb[0].mxu0
  %196 = vmatprep.mubr.f32.mxu0 0.0
  %197 = vmatmul.mubr.f32.gmra.mrb[0].mxu0 %v101
  %v198 = vpop.f32.mrb[0].mxu0
  %v199 = vadd.f32 %v70, %v198
  %v200 = vpop.f32.mrb[0].mxu0
  %201 = vmatprep.mubr.f32.mxu0 0.0
  %202 = vmatmul.mubr.f32.gmra.mrb[0].mxu0 %v104
  %v203 = vpop.f32.mrb[0].mxu0
  %v204 = vadd.f32 %v75, %v203
  %v205 = vpop.f32.mrb[0].mxu0
  %206 = vmatprep.mubr.f32.mxu0 0.0
  %207 = vmatmul.mubr.f32.gmra.mrb[0].mxu0 %v107
  %v208 = vpop.f32.mrb[0].mxu0
  %v209 = vadd.f32 %v80, %v208
  %v210 = vpop.f32.mrb[0].mxu0
  %211 = vmatprep.mubr.f32.mxu0 0.0
  %212 = vmatmul.mubr.f32.gmra.mrb[0].mxu0 %v110
  %v213 = vpop.f32.mrb[0].mxu0
  %v214 = vadd.f32 %v85, %v213
  %v215 = vpop.f32.mrb[0].mxu0
  %216 = vdwg.mxu0
  %v217 = vmax.f32 %v179, 0.0
  %v218 = vmax.f32 %v184, 0.0
  %v219 = vmax.f32 %v189, 0.0
  %v220 = vmax.f32 %v194, 0.0
  %v221 = vmax.f32 %v199, 0.0
  %v222 = vmax.f32 %v204, 0.0
  %v223 = vmax.f32 %v209, 0.0
  %v224 = vmax.f32 %v214, 0.0
  %226 = vset.pattern.permute.xlu0 0
  %227 = vperm.xlu0 %226, %v39
  %v228 = vpop.permute.xlu0 %227
  %231 = vset.pattern.permute.xlu0 0
  %232 = vperm.xlu0 %231, %v40
  %v233 = vpop.permute.xlu0 %232
  %236 = vset.pattern.permute.xlu0 0
  %237 = vperm.xlu0 %236, %v41
  %v238 = vpop.permute.xlu0 %237
  %241 = vset.pattern.permute.xlu0 0
  %242 = vperm.xlu0 %241, %v42
  %v243 = vpop.permute.xlu0 %242
  %vm245 = vcmask 523264
  %v247 = vsel %vm245, %v23, 0
  %v250 = vsel %vm245, %v24, 0
  %v253 = vsel %vm245, %v25, 0
  %v256 = vsel %vm245, %v26, 0
  %258 = vmatprep.subr.mxu0 0.0
  %259 = vmatpush1.msra.mxu0 %v217
  %260 = vmatprep.subr.mxu0 0.0
  %261 = vmatpush1.msra.mxu0 %v218
  %262 = vmatprep.subr.mxu0 0.0
  %263 = vmatpush1.msra.mxu0 %v219
  %264 = vmatprep.subr.mxu0 0.0
  %265 = vmatpush1.msra.mxu0 %v220
  %266 = vmatprep.subr.mxu0 0.0
  %267 = vmatpush1.msra.mxu0 %v221
  %268 = vmatprep.subr.mxu0 0.0
  %269 = vmatpush1.msra.mxu0 %v222
  %270 = vmatprep.subr.mxu0 0.0
  %271 = vmatpush1.msra.mxu0 %v223
  %272 = vmatprep.subr.mxu0 0.0
  %273 = vmatpush1.msra.mxu0 %v224
  %274 = vmatprep.subr.mxu0 0.0
  %275 = vmatpush1.msra.mxu0 0.0
  %276 = vmatprep.subr.mxu0 0.0
  %277 = vmatpush1.msra.mxu0 0.0
  %278 = vmatprep.subr.mxu0 0.0
  %279 = vmatpush1.msra.mxu0 0.0
  %280 = vmatprep.subr.mxu0 0.0
  %281 = vmatpush1.msra.mxu0 0.0
  %282 = vmatprep.subr.mxu0 0.0
  %283 = vmatpush1.msra.mxu0 0.0
  %284 = vmatprep.subr.mxu0 0.0
  %285 = vmatpush1.msra.mxu0 0.0
  %286 = vmatprep.subr.mxu0 0.0
  %287 = vmatpush1.msra.mxu0 0.0
  %288 = vmatprep.subr.mxu0 0.0
  %289 = vmatpush1.msra.mxu0 0.0
  %290 = vmatprep.subr.mxu0 0.0
  %291 = vmatpush1.msra.mxu0 0.0
  %292 = vmatprep.subr.mxu0 0.0
  %293 = vmatpush1.msra.mxu0 0.0
  %294 = vmatprep.subr.mxu0 0.0
  %295 = vmatpush1.msra.mxu0 0.0
  %296 = vmatprep.subr.mxu0 0.0
  %297 = vmatpush1.msra.mxu0 0.0
  %298 = vmatprep.subr.mxu0 0.0
  %299 = vmatpush1.msra.mxu0 0.0
  %300 = vmatprep.subr.mxu0 0.0
  %301 = vmatpush1.msra.mxu0 0.0
  %302 = vmatprep.subr.mxu0 0.0
  %303 = vmatpush1.msra.mxu0 0.0
  %304 = vmatprep.subr.mxu0 0.0
  %305 = vmatpush1.msra.mxu0 0.0
  %306 = vmatprep.subr.mxu0 0.0
  %307 = vmatpush1.msra.mxu0 0.0
  %308 = vmatprep.subr.mxu0 0.0
  %309 = vmatpush1.msra.mxu0 0.0
  %310 = vmatprep.subr.mxu0 0.0
  %311 = vmatpush1.msra.mxu0 0.0
  %312 = vmatprep.subr.mxu0 0.0
  %313 = vmatpush1.msra.mxu0 0.0
  %314 = vmatprep.subr.mxu0 0.0
  %315 = vmatpush1.msra.mxu0 0.0
  %316 = vmatprep.subr.mxu0 0.0
  %317 = vmatpush1.msra.mxu0 0.0
  %318 = vmatprep.subr.mxu0 0.0
  %319 = vmatpush1.msra.mxu0 0.0
  %320 = vmatprep.subr.mxu0 0.0
  %321 = vmatpush1.msra.mxu0 0.0
  %322 = vmatprep.mubr.f32.mxu0 0.0
  %323 = vmatmul.mubr.f32.gmra.mrb[0].mxu0 %v247
  %v324 = vpop.f32.mrb[0].mxu0
  %v325 = vadd.f32 %v228, %v324
  %v326 = vpop.f32.mrb[0].mxu0
  %327 = vmatprep.mubr.f32.mxu0 0.0
  %328 = vmatmul.mubr.f32.gmra.mrb[0].mxu0 %v250
  %v329 = vpop.f32.mrb[0].mxu0
  %v330 = vadd.f32 %v233, %v329
  %v331 = vpop.f32.mrb[0].mxu0
  %332 = vmatprep.mubr.f32.mxu0 0.0
  %333 = vmatmul.mubr.f32.gmra.mrb[0].mxu0 %v253
  %v334 = vpop.f32.mrb[0].mxu0
  %v335 = vadd.f32 %v238, %v334
  %v336 = vpop.f32.mrb[0].mxu0
  %337 = vmatprep.mubr.f32.mxu0 0.0
  %338 = vmatmul.mubr.f32.gmra.mrb[0].mxu0 %v256
  %v339 = vpop.f32.mrb[0].mxu0
  %v340 = vadd.f32 %v243, %v339
  %v341 = vpop.f32.mrb[0].mxu0
  %342 = vdwg.mxu0
  %v343 = vmax.f32 %v325, 0.0
  %v344 = vmax.f32 %v330, 0.0
  %v345 = vmax.f32 %v335, 0.0
  %v346 = vmax.f32 %v340, 0.0
  %348 = vset.pattern.permute.xlu0 0
  %349 = vperm.xlu0 %348, %v43
  %v350 = vpop.permute.xlu0 %349
  %353 = vset.pattern.permute.xlu0 0
  %354 = vperm.xlu0 %353, %v44
  %v355 = vpop.permute.xlu0 %354
  %358 = vset.pattern.permute.xlu0 0
  %359 = vperm.xlu0 %358, %v45
  %v360 = vpop.permute.xlu0 %359
  %363 = vset.pattern.permute.xlu0 0
  %364 = vperm.xlu0 %363, %v46
  %v365 = vpop.permute.xlu0 %364
  %vm367 = vcmask 261120
  %v369 = vsel %vm367, %v27, 0
  %v372 = vsel %vm367, %v28, 0
  %v375 = vsel %vm367, %v29, 0
  %v378 = vsel %vm367, %v30, 0
  %380 = vmatprep.subr.mxu0 0.0
  %381 = vmatpush1.msra.mxu0 %v343
  %382 = vmatprep.subr.mxu0 0.0
  %383 = vmatpush1.msra.mxu0 %v344
  %384 = vmatprep.subr.mxu0 0.0
  %385 = vmatpush1.msra.mxu0 %v345
  %386 = vmatprep.subr.mxu0 0.0
  %387 = vmatpush1.msra.mxu0 %v346
  %388 = vmatprep.subr.mxu0 0.0
  %389 = vmatpush1.msra.mxu0 0.0
  %390 = vmatprep.subr.mxu0 0.0
  %391 = vmatpush1.msra.mxu0 0.0
  %392 = vmatprep.subr.mxu0 0.0
  %393 = vmatpush1.msra.mxu0 0.0
  %394 = vmatprep.subr.mxu0 0.0
  %395 = vmatpush1.msra.mxu0 0.0
  %396 = vmatprep.subr.mxu0 0.0
  %397 = vmatpush1.msra.mxu0 0.0
  %398 = vmatprep.subr.mxu0 0.0
  %399 = vmatpush1.msra.mxu0 0.0
  %400 = vmatprep.subr.mxu0 0.0
  %401 = vmatpush1.msra.mxu0 0.0
  %402 = vmatprep.subr.mxu0 0.0
  %403 = vmatpush1.msra.mxu0 0.0
  %404 = vmatprep.subr.mxu0 0.0
  %405 = vmatpush1.msra.mxu0 0.0
  %406 = vmatprep.subr.mxu0 0.0
  %407 = vmatpush1.msra.mxu0 0.0
  %408 = vmatprep.subr.mxu0 0.0
  %409 = vmatpush1.msra.mxu0 0.0
  %410 = vmatprep.subr.mxu0 0.0
  %411 = vmatpush1.msra.mxu0 0.0
  %412 = vmatprep.subr.mxu0 0.0
  %413 = vmatpush1.msra.mxu0 0.0
  %414 = vmatprep.subr.mxu0 0.0
  %415 = vmatpush1.msra.mxu0 0.0
  %416 = vmatprep.subr.mxu0 0.0
  %417 = vmatpush1.msra.mxu0 0.0
  %418 = vmatprep.subr.mxu0 0.0
  %419 = vmatpush1.msra.mxu0 0.0
  %420 = vmatprep.subr.mxu0 0.0
  %421 = vmatpush1.msra.mxu0 0.0
  %422 = vmatprep.subr.mxu0 0.0
  %423 = vmatpush1.msra.mxu0 0.0
  %424 = vmatprep.subr.mxu0 0.0
  %425 = vmatpush1.msra.mxu0 0.0
  %426 = vmatprep.subr.mxu0 0.0
  %427 = vmatpush1.msra.mxu0 0.0
  %428 = vmatprep.subr.mxu0 0.0
  %429 = vmatpush1.msra.mxu0 0.0
  %430 = vmatprep.subr.mxu0 0.0
  %431 = vmatpush1.msra.mxu0 0.0
  %432 = vmatprep.subr.mxu0 0.0
  %433 = vmatpush1.msra.mxu0 0.0
  %434 = vmatprep.subr.mxu0 0.0
  %435 = vmatpush1.msra.mxu0 0.0
  %436 = vmatprep.subr.mxu0 0.0
  %437 = vmatpush1.msra.mxu0 0.0
  %438 = vmatprep.subr.mxu0 0.0
  %439 = vmatpush1.msra.mxu0 0.0
  %440 = vmatprep.subr.mxu0 0.0
  %441 = vmatpush1.msra.mxu0 0.0
  %442 = vmatprep.subr.mxu0 0.0
  %443 = vmatpush1.msra.mxu0 0.0
  %444 = vmatprep.mubr.f32.mxu0 0.0
  %445 = vmatmul.mubr.f32.gmra.mrb[0].mxu0 %v369
  %v446 = vpop.f32.mrb[0].mxu0
  %v447 = vadd.f32 %v350, %v446
  %v448 = vpop.f32.mrb[0].mxu0
  %449 = vmatprep.mubr.f32.mxu0 0.0
  %450 = vmatmul.mubr.f32.gmra.mrb[0].mxu0 %v372
  %v451 = vpop.f32.mrb[0].mxu0
  %v452 = vadd.f32 %v355, %v451
  %v453 = vpop.f32.mrb[0].mxu0
  %454 = vmatprep.mubr.f32.mxu0 0.0
  %455 = vmatmul.mubr.f32.gmra.mrb[0].mxu0 %v375
  %v456 = vpop.f32.mrb[0].mxu0
  %v457 = vadd.f32 %v360, %v456
  %v458 = vpop.f32.mrb[0].mxu0
  %459 = vmatprep.mubr.f32.mxu0 0.0
  %460 = vmatmul.mubr.f32.gmra.mrb[0].mxu0 %v378
  %v461 = vpop.f32.mrb[0].mxu0
  %v462 = vadd.f32 %v365, %v461
  %v463 = vpop.f32.mrb[0].mxu0
  %464 = vdwg.mxu0
  %465 = vst [vmem:[%s3] sm:$0xff] %v447
  %466 = vst [vmem:[%s3 + $0x8] sm:$0xff] %v452
  %467 = vst [vmem:[%s3 + $0x10] sm:$0xff] %v457
  %468 = vst [vmem:[%s3 + $0x18] sm:$0x3f] %v462
  // Predicated region
  $region14: #{neural_network_forward.1} parent=0 // pred_check
    _
  $region15: #{neural_network_forward.1} parent=0 // pred_check_branch
    %470 = sbr.rel (0) target = $region17
  $region16: #{neural_network_forward.1} parent=0 // pred_region
    _
  $region17: #{neural_network_forward.1} parent=0 // pred_fallthru
    _
  // Predicated region
  $region18: #{neural_network_forward.1} parent=0 // pred_check
    _
  $region19: #{neural_network_forward.1} parent=0 // pred_check_branch
    %472 = sbr.rel (0) target = $region21
  $region20: #{neural_network_forward.1} parent=0 // pred_region
    _
  $region21: #{neural_network_forward.1} parent=0 // pred_fallthru
    _

</llo_original>
